<compile_context>
chip_gen: v5e
topology: v5e:2x2
jax: 0.10.0
libtpu: 0.0.40
codegen_flags: <defaults>
</compile_context>

<pallas_src>
import functools

import numpy as np
import jax
import jax.numpy as jnp
from jax.experimental import pallas as pl
from jax.experimental.pallas import tpu as pltpu

_KDIM = 8          # contraction dim for the coordinate dot (3 used, padded to 8)
_BF16_MIN_C = 128  # channels at/above which the mixing matmul runs in bf16


# ----------------------------- Pallas kernel -----------------------------

def _synthesis_input_kernel(g3_ref, coef_ref, w_ref, out_ref, *, sub):
    # g3_ref:   [8, THW]    rows: x-coord, y-coord, ones, zero padding
    # coef_ref: [1, C, 8]   per-batch 2*pi*[fx, fy, phase, 0...]
    # w_ref:    [1, C, C]   per-batch effective mixing weight (amplitudes folded)
    # out_ref:  [1, C, THW]
    w_eff = w_ref[0]                       # load once per grid step
    mix_dtype = w_eff.dtype
    thw = out_ref.shape[2]
    n_sub = thw // sub
    # Static unrolled column-chunk loop: no cross-chunk dependency, so the LLO
    # scheduler can overlap the VALU sin of chunk k+1 with the MXU dot of chunk k.
    for k in range(n_sub):
        lo, hi = k * sub, (k + 1) * sub
        # arg[c, p] = 2*pi*(fx[c]*x[p] + fy[c]*y[p] + phase[c])  — one MXU dot, K=8
        arg = jnp.dot(coef_ref[0], g3_ref[:, lo:hi],
                      preferred_element_type=jnp.float32)       # [C, sub] f32
        feat = jnp.sin(arg).astype(mix_dtype)                   # [C, sub]
        out_ref[0, :, lo:hi] = jnp.dot(
            w_eff, feat, preferred_element_type=jnp.float32).astype(out_ref.dtype)


# ----------------------------- tiling / VMEM policy -----------------------------

def _vmem_budget_bytes():
    try:
        cap = int(pltpu.get_tpu_info().vmem_capacity_bytes)
    except Exception:
        cap = 64 * 1024 * 1024   # conservative fallback (v7x-sized)
    # stay within ~3/4 of physical VMEM: ~48 MiB on v7x, capped at 100 MiB on v5e/v6e
    return min((cap * 3) // 4, 100 * 1024 * 1024)


def _choose_sub(thw):
    """In-kernel column sub-chunk (multiple of 128) for sin/matmul overlap."""
    if thw <= 512:
        return thw
    for s in (512, 384, 256, 128):
        if thw % s == 0:
            return s
    return thw


def _choose_spatial_tile(HW, C, B, out_bytes, w_bytes, budget):
    """Pick a lane-dense spatial tile: biggest that fits the VMEM budget, with at
    least 2 grid points overall so both v7x TensorCores get work."""
    hw128 = int(pl.cdiv(HW, 128)) * 128

    def est(thw):
        sub = _choose_sub(thw)
        return (2 * C * thw * out_bytes        # output tile (double-buffered)
                + 2 * _KDIM * thw * 4          # coordinate rows (double-buffered)
                + 2 * C * C * w_bytes          # per-batch weight (<= 2 buffers)
                + 2 * C * _KDIM * 4            # per-batch coefficients
                + 4 * C * sub * 4)             # arg/feat/cast intermediates + slack

    thw = 128
    for cand in [hw128] + [t for t in (4096, 2048, 1024, 512, 256) if t < hw128]:
        if est(cand) <= budget:
            thw = cand
            break
    # megacore occupancy: need B * n_hw >= 2 (v7x has 2 TensorCores)
    if B * int(pl.cdiv(HW, thw)) < 2 and hw128 > 128:
        thw = int(pl.cdiv(int(pl.cdiv(HW, 2)), 128)) * 128
    hw_pad = int(pl.cdiv(HW, thw)) * thw
    return thw, hw_pad


# ----------------------------- pallas_call wrapper -----------------------------

def _synthesis_input_pallas(g3, coef, w_eff, *, thw, out_dtype, vmem_limit):
    B, C, _ = coef.shape
    hw_pad = g3.shape[1]
    n_hw = hw_pad // thw
    sub = _choose_sub(thw)
    kernel = functools.partial(_synthesis_input_kernel, sub=sub)

    # coef / w_eff only change along the (outer) batch axis. When the inner hw axis
    # has >= 2 steps, single-buffer them: saves VMEM and their DMA is only exposed
    # at batch boundaries. With n_hw == 1 keep default double-buffering so the next
    # batch's weight is prefetched.
    if n_hw >= 2:
        coef_spec = pl.BlockSpec((1, C, _KDIM), lambda b, s: (b, 0, 0),
                                 pipeline_mode=pl.Buffered(1))
        w_spec = pl.BlockSpec((1, C, C), lambda b, s: (b, 0, 0),
                              pipeline_mode=pl.Buffered(1))
    else:
        coef_spec = pl.BlockSpec((1, C, _KDIM), lambda b, s: (b, 0, 0))
        w_spec = pl.BlockSpec((1, C, C), lambda b, s: (b, 0, 0))

    return pl.pallas_call(
        kernel,
        out_shape=jax.ShapeDtypeStruct((B, C, hw_pad), out_dtype),
        grid=(B, n_hw),
        in_specs=[
            pl.BlockSpec((_KDIM, thw), lambda b, s: (0, s)),   # coords: tiled along HW
            coef_spec,                                         # per-batch coefficients
            w_spec,                                            # per-batch effective weight
        ],
        out_specs=pl.BlockSpec((1, C, thw), lambda b, s: (b, 0, s)),
        compiler_params=pltpu.CompilerParams(
            dimension_semantics=("parallel", "parallel"),
            vmem_limit_bytes=int(vmem_limit),
        ),
    )(g3, coef, w_eff)


# ----------------------------- parameter init -----------------------------

def init_synthesis_input(key, w_dim, channels, size, sampling_rate, bandwidth):
    assert bandwidth < sampling_rate / 2.0, "bandwidth must be < sampling_rate/2"
    k1, k2, k3, k4 = jax.random.split(key, 4)
    size2 = np.broadcast_to(np.asarray(size), [2])
    Wp, Hp = int(size2[0]), int(size2[1])
    HW = Hp * Wp
    sr = float(sampling_rate)

    freqs = jax.random.normal(k1, (channels, 2), jnp.float32)
    radii = jnp.sqrt(jnp.sum(freqs ** 2, axis=1, keepdims=True))
    freqs = freqs / (radii * jnp.exp(radii ** 2) ** 0.25)
    freqs = freqs * bandwidth

    phases = jax.random.uniform(k2, (channels,), jnp.float32) - 0.5
    weight = jax.random.normal(k3, (channels, channels), jnp.float32)

    # affine = FullyConnectedLayer(w_dim, 4, weight_init=0, bias_init=[1,0,0,0])
    affine_w = jax.random.normal(k4, (4, w_dim), jnp.float32) * 0.0  # weight_init=0
    affine_b = jnp.array([1.0, 0.0, 0.0, 0.0], jnp.float32)

    # Static precompute (independent of w): coordinate/ones rows, padded to a
    # multiple of 128 lanes, and the 1/sqrt(C)-scaled mixing weight.
    # torch affine_grid(theta, [1,1,H,W], align_corners=False), computed analytically,
    # flattened row-major (p = i*W + j), plus a constant-ones row for the phase term.
    sx = 0.5 * float(size2[0]) / sr
    sy = 0.5 * float(size2[1]) / sr
    xb = (2.0 * jnp.arange(Wp, dtype=jnp.float32) + 1.0) / Wp - 1.0
    yb = (2.0 * jnp.arange(Hp, dtype=jnp.float32) + 1.0) / Hp - 1.0
    gx = jnp.tile((sx * xb)[None, :], (Hp, 1)).reshape(-1)            # [HW]
    gy = jnp.tile((sy * yb)[:, None], (1, Wp)).reshape(-1)            # [HW]
    g3 = jnp.stack([gx, gy, jnp.ones((HW,), jnp.float32)], axis=0)    # [3, HW]
    hw128 = int(pl.cdiv(HW, 128)) * 128
    g3 = jnp.pad(g3, ((0, _KDIM - 3), (0, hw128 - HW)))               # [8, hw128]

    w_scaled = weight / np.sqrt(channels)                             # [C, C]

    return dict(
        w_dim=w_dim, channels=channels, size=size2,
        sampling_rate=sr, bandwidth=float(bandwidth),
        freqs=freqs, phases=phases, weight=weight,
        affine_w=affine_w, affine_b=affine_b,
        transform=jnp.eye(3, dtype=jnp.float32),
        g3=g3, w_scaled=w_scaled, hw=HW,
    )


# ------------------ per-batch affine / transform glue (tiny) ------------------

def _affine_and_transform(params, w):
    """Returns per-batch freqs [B,C,2], phases [B,C], amplitudes [B,C]."""
    B = w.shape[0]
    sr = params["sampling_rate"]
    bw = params["bandwidth"]

    weight_gain = 1.0 / np.sqrt(params["w_dim"])
    t = w.astype(jnp.float32) @ (params["affine_w"] * weight_gain).T + params["affine_b"][None]
    # NOTE: like the PyTorch module, this can produce NaN if ||t[:, :2]|| ~ 0.
    t = t / jnp.linalg.norm(t[:, :2], axis=1, keepdims=True)

    eye3 = jnp.eye(3, dtype=jnp.float32)
    m_r = jnp.tile(eye3[None], (B, 1, 1))
    m_r = m_r.at[:, 0, 0].set(t[:, 0]).at[:, 0, 1].set(-t[:, 1])
    m_r = m_r.at[:, 1, 0].set(t[:, 1]).at[:, 1, 1].set(t[:, 0])
    m_t = jnp.tile(eye3[None], (B, 1, 1))
    m_t = m_t.at[:, 0, 2].set(-t[:, 2]).at[:, 1, 2].set(-t[:, 3])
    transforms = m_r @ m_t @ params["transform"][None]                 # [B, 3, 3]

    freqs0 = params["freqs"][None]                                     # [1, C, 2]
    phases_b = params["phases"][None] + jnp.squeeze(
        freqs0 @ transforms[:, :2, 2:], axis=2)                        # [B, C]
    freqs_b = freqs0 @ transforms[:, :2, :2]                           # [B, C, 2]
    amps = jnp.clip(
        1.0 - (jnp.linalg.norm(freqs_b, axis=2) - bw) / (sr / 2.0 - bw), 0.0, 1.0)  # [B, C]
    return freqs_b, phases_b, amps


# ----------------------------- forward (glue + kernel) -----------------------------

def synthesis_input_forward(params, w, *, out_dtype=jnp.float32):
    B = w.shape[0]
    C = params["channels"]
    size = params["size"]          # size[0] = width, size[1] = height
    Wp, Hp = int(size[0]), int(size[1])
    HW = params["hw"]

    freqs_b, phases_b, amps = _affine_and_transform(params, w)

    # per-batch coefficients for the in-kernel MXU dot: 2*pi*[fx, fy, phase, 0...]
    coef = jnp.concatenate([freqs_b, phases_b[..., None]], axis=2) * (2.0 * np.pi)  # [B, C, 3]
    coef = jnp.pad(coef, ((0, 0), (0, 0), (0, _KDIM - 3)))                          # [B, C, 8]

    # fold amplitudes into the mixing weight ONCE per batch (B*C*C work here,
    # instead of per spatial grid step inside the kernel)
    use_bf16 = C >= _BF16_MIN_C
    w_eff = params["w_scaled"][None, :, :] * amps[:, None, :]                       # [B, C, C]
    if use_bf16:
        w_eff = w_eff.astype(jnp.bfloat16)

    out_bytes = np.dtype(out_dtype).itemsize
    w_bytes = 2 if use_bf16 else 4
    budget = _vmem_budget_bytes()
    thw, hw_pad = _choose_spatial_tile(HW, C, B, out_bytes, w_bytes, budget)

    g3 = params["g3"]                                                               # [8, hw128]
    if hw_pad != g3.shape[1]:          # only when the tile rounds past hw128 (rare)
        g3 = jnp.pad(g3, ((0, 0), (0, hw_pad - g3.shape[1])))

    out = _synthesis_input_pallas(g3, coef, w_eff, thw=thw,
                                  out_dtype=out_dtype, vmem_limit=budget)           # [B, C, hw_pad]
    return out[:, :, :HW].reshape(B, C, Hp, Wp)                                     # NCHW


# pure-JAX reference of the hot path for validation
def _reference_forward(params, w):
    B = w.shape[0]
    C = params["channels"]
    sr = params["sampling_rate"]
    size = params["size"]
    Wp, Hp = int(size[0]), int(size[1])

    freqs_b, phases_b, amps = _affine_and_transform(params, w)

    sx = 0.5 * float(size[0]) / sr
    sy = 0.5 * float(size[1]) / sr
    xb = (2.0 * jnp.arange(Wp, dtype=jnp.float32) + 1.0) / Wp - 1.0
    yb = (2.0 * jnp.arange(Hp, dtype=jnp.float32) + 1.0) / Hp - 1.0
    gx = jnp.tile((sx * xb)[None, :], (Hp, 1)).reshape(-1)
    gy = jnp.tile((sy * yb)[:, None], (1, Wp)).reshape(-1)
    g = jnp.stack([gx, gy], axis=1)                            # [HW, 2]

    x = jnp.einsum("pk,bck->bpc", g, freqs_b)                  # [B, HW, C]
    x = x + phases_b[:, None, :]
    x = jnp.sin(x * (2.0 * np.pi)) * amps[:, None, :]
    x = x @ (params["weight"] / np.sqrt(C)).T                  # [B, HW, C]
    return jnp.transpose(x, (0, 2, 1)).reshape(B, C, Hp, Wp)


if __name__ == "__main__":
    # small, module-consistent shapes
    B, W_DIM, CHANNELS, SIZE = 2, 32, 16, 16
    SAMPLING_RATE, BANDWIDTH = 16.0, 2.0

    key = jax.random.PRNGKey(0)
    k_params, k_w = jax.random.split(key)
    params = init_synthesis_input(k_params, W_DIM, CHANNELS, SIZE, SAMPLING_RATE, BANDWIDTH)
    w = jax.random.normal(k_w, (B, W_DIM), jnp.float32)

    out = synthesis_input_forward(params, w)
    out = jax.block_until_ready(out)
    assert out.shape == (B, CHANNELS, SIZE, SIZE), out.shape

    ref = _reference_forward(params, w)
    np.testing.assert_allclose(np.asarray(out), np.asarray(ref), rtol=5e-3, atol=5e-3)

    print("KERNEL_OK")
</pallas_src>

<mosaic_0001>
module attributes {stable_mosaic.version = 11 : i64} {
  func.func @_synthesis_input_kernel(%arg0: i32, %arg1: i32, %arg2: memref<8x256xf32, #tpu.memory_space<vmem>>, %arg3: memref<1x16x8xf32, #tpu.memory_space<vmem>>, %arg4: memref<1x16x16xf32, #tpu.memory_space<vmem>>, %arg5: memref<1x16x256xf32, #tpu.memory_space<vmem>>) attributes {dimension_semantics = [#tpu.dimension_semantics<parallel>, #tpu.dimension_semantics<parallel>], iteration_bounds = array<i64: 2, 1>, scalar_prefetch = 0 : i64, scratch_operands = 0 : i64, tpu.core_type = #tpu.core_type<tc>, window_params = [{transform_indices = @transform_0, window_bounds = array<i64: 8, 256>}, {transform_indices = @transform_1, window_bounds = array<i64: 1, 16, 8>}, {transform_indices = @transform_2, window_bounds = array<i64: 1, 16, 16>}, {transform_indices = @transform_3, window_bounds = array<i64: 1, 16, 256>}]} {
    %c0 = arith.constant 0 : index
    %c0_0 = arith.constant 0 : index
    %c0_1 = arith.constant 0 : index
    %0 = vector.load %arg4[%c0, %c0_0, %c0_1] : memref<1x16x16xf32, #tpu.memory_space<vmem>>, vector<1x16x16xf32>
    %1 = vector.shape_cast %0 : vector<1x16x16xf32> to vector<16x16xf32>
    %c0_2 = arith.constant 0 : index
    %c0_3 = arith.constant 0 : index
    %c0_4 = arith.constant 0 : index
    %2 = vector.load %arg3[%c0_2, %c0_3, %c0_4] : memref<1x16x8xf32, #tpu.memory_space<vmem>>, vector<1x16x8xf32>
    %3 = vector.shape_cast %2 : vector<1x16x8xf32> to vector<16x8xf32>
    %c0_5 = arith.constant 0 : index
    %c0_6 = arith.constant 0 : index
    %4 = vector.load %arg2[%c0_5, %c0_6] : memref<8x256xf32, #tpu.memory_space<vmem>>, vector<8x256xf32>
    %cst = arith.constant dense<0.000000e+00> : vector<16x256xf32>
    %5 = tpu.matmul %3, %4, %cst {dimension_numbers = #tpu.dot_dimension_numbers<[1], [0], [0], [1], [0, 0, 1, 1], [], []>} : vector<16x8xf32>, vector<8x256xf32>, vector<16x256xf32> -> vector<16x256xf32>
    %6 = math.sin %5 : vector<16x256xf32>
    %cst_7 = arith.constant dense<0.000000e+00> : vector<16x256xf32>
    %7 = tpu.matmul %1, %6, %cst_7 {dimension_numbers = #tpu.dot_dimension_numbers<[1], [0], [0], [1], [0, 0, 1, 1], [], []>} : vector<16x16xf32>, vector<16x256xf32>, vector<16x256xf32> -> vector<16x256xf32>
    %c0_8 = arith.constant 0 : index
    %c0_9 = arith.constant 0 : index
    %c0_10 = arith.constant 0 : index
    %8 = vector.load %arg5[%c0_8, %c0_9, %c0_10] : memref<1x16x256xf32, #tpu.memory_space<vmem>>, vector<1x16x256xf32>
    %9 = vector.shape_cast %8 : vector<1x16x256xf32> to vector<16x256xf32>
    %10 = vector.shape_cast %7 : vector<16x256xf32> to vector<1x16x256xf32>
    tpu.vector_store %arg5[%c0_8, %c0_9, %c0_10], %10 {strides = array<i32>} : memref<1x16x256xf32, #tpu.memory_space<vmem>>, vector<1x16x256xf32>,
    return
  }
  func.func @transform_0(%arg0: i32, %arg1: i32) -> (i32, i32) {
    %c0_i32 = arith.constant 0 : i32
    %c0_i32_0 = arith.constant 0 : i32
    return %c0_i32, %arg1 : i32, i32
  }
  func.func @transform_1(%arg0: i32, %arg1: i32) -> (i32, i32, i32) {
    %c0_i32 = arith.constant 0 : i32
    %c0_i32_0 = arith.constant 0 : i32
    %c0_i32_1 = arith.constant 0 : i32
    return %arg0, %c0_i32, %c0_i32_0 : i32, i32, i32
  }
  func.func @transform_2(%arg0: i32, %arg1: i32) -> (i32, i32, i32) {
    %c0_i32 = arith.constant 0 : i32
    %c0_i32_0 = arith.constant 0 : i32
    %c0_i32_1 = arith.constant 0 : i32
    return %arg0, %c0_i32, %c0_i32_0 : i32, i32, i32
  }
  func.func @transform_3(%arg0: i32, %arg1: i32) -> (i32, i32, i32) {
    %c0_i32 = arith.constant 0 : i32
    %c0_i32_0 = arith.constant 0 : i32
    return %arg0, %c0_i32, %arg1 : i32, i32, i32
  }
}

</mosaic_0001>

<llo_original>
// kernel: tpu_custom_call.1
$region0: #{tpu_custom_call.1}
  #allocation0 [shape = 'u32[]', space=smem, size = 0x4, offset = 0x4, fixed_abs, tag = 'smem constant byte address 0x4 - core index']
  #allocation1 [shape = 'u32[72,128]{1,0:T(1,128)}', space=vmem, size = 0x9000, scoped, tag = 'internal scratch']
  %s0 = inlined_call_operand.vmem [shape: f32[8,256], index: 0, kind: input, shape index: {}]
  %s1 = inlined_call_operand.vmem [shape: f32[2,16,8], index: 1, kind: input, shape index: {}]
  %s2 = inlined_call_operand.vmem [shape: f32[2,16,16], index: 2, kind: input, shape index: {}]
  %s3 = inlined_call_operand.hbm [shape: f32[2,16,256], index: 3, kind: output, shape index: {}]
  %s4 = sld [smem:[#allocation0]]
  $region45: #{tpu_custom_call.1} parent=0
    _
  %s6 = ssub.s32 1, %s4
  %s7 = scalar_select 0, %s6, %s4
  $region1: #{tpu_custom_call.1} parent=0
    #allocation2 [shape = 'u8[32768]{0}', space=vmem, size = 0x8000, scoped, tag = 'output window, operand 0']
    #allocation3 [shape = 's32[2]{0}', space=sflag, size = 0x8, scoped, tag = 'scoped memory for tpu_custom_call.1']
    %8 = vsyncpa [#allocation3], 0
    %s9 = scalar_lea.sflag [#allocation3], 1
    %10 = vsyncpa %s9, 0
    loop: start=0, step=1, limit=4
    $region2: #{tpu_custom_call.1} parent=1 // loop_pre_header
      _
    $region3: #{tpu_custom_call.1} parent=1 // loop_header
      %s12 = sphi 0, %s16
      %p13 = scmp.ge.s32.totalorder %s12, 4
      %s19 = sphi 0, %s31
      %s20 = sphi 0, %s27
      %s21 = sphi 0, %s19
      %s22 = sphi 0, %s20
      %s23 = sphi 0, %s21
      %s24 = sphi 0, %s22
      %s34 = sphi 0, %s36
      %s37 = sphi 0, %s34
      %s38 = sphi 0, %s37
      %s54 = sphi 0, %s38
      %s60 = sphi 0, %s62
      %s63 = sphi 0, %s60
      %s64 = sphi 0, %s63
      %s80 = sphi 0, %s64
      %s86 = sphi 0, %s88
      %s89 = sphi 0, %s86
      %s90 = sphi 0, %s89
      %s106 = sphi 0, %s90
      %s114 = sphi 0, %s116
      %s117 = sphi 0, %s114
      %s118 = sphi 0, %s117
      %s134 = sphi 0, %s118
    $region4: #{tpu_custom_call.1} parent=1 // loop_header_branch
      %15 = sbr.rel (%p13) target = $region8
    $region5: #{tpu_custom_call.1} parent=1 // loop_body
      %s17 = ssub.s32 %s12, 1
      %s18 = ssub.s32 %s12, 2
      %s25 = sadd.s32 1, %s20
      %p26 = scmp.ge.s32.totalorder %s25, 1
      %s27 = scalar_select %p26, 0, %s25
      %s28 = sadd.s32 1, %s19
      %s29 = scalar_select %p26, %s28, %s19
      %p30 = scmp.ge.s32.totalorder %s29, 2
      %s31 = scalar_select %p30, 0, %s29
      %s32 = ssub.s32 %s20, %s27
      %p33 = scmp.eq.s32.totalorder %s32, 0
      %s35 = sadd.s32 %s34, 1
      %s36 = scalar_select %p33, %s34, %s35
      %p39 = pneg %p33
      %p40 = scmp.eq.s32.totalorder %s12, 1
      %p41 = por %p39, %p40
      %p42 = scmp.ne.s32.totalorder %s34, %s37
      %p43 = scmp.eq.s32.totalorder %s12, 0
      %p44 = por %p42, %p43
      %p45 = scmp.ne.s32.totalorder %s34, %s37
      %p46 = scmp.eq.s32.totalorder %s17, 1
      %p47 = por %p45, %p46
      %p48 = scmp.ne.s32.totalorder %s37, %s38
      %p49 = scmp.eq.s32.totalorder %s17, 0
      %p50 = por %p48, %p49
      %p51 = scmp.ne.s32.totalorder %s37, %s38
      %p52 = scmp.eq.s32.totalorder %s18, 1
      %p53 = por %p51, %p52
      %p55 = scmp.ne.s32.totalorder %s38, %s54
      %p56 = scmp.eq.s32.totalorder %s18, 0
      %p57 = por %p55, %p56
      %s58 = ssub.s32 %s19, %s31
      %p59 = scmp.eq.s32.totalorder %s58, 0
      %s61 = sadd.s32 %s60, 1
      %s62 = scalar_select %p59, %s60, %s61
      %p65 = pneg %p59
      %p66 = scmp.eq.s32.totalorder %s12, 1
      %p67 = por %p65, %p66
      %p68 = scmp.ne.s32.totalorder %s60, %s63
      %p69 = scmp.eq.s32.totalorder %s12, 0
      %p70 = por %p68, %p69
      %p71 = scmp.ne.s32.totalorder %s60, %s63
      %p72 = scmp.eq.s32.totalorder %s17, 1
      %p73 = por %p71, %p72
      %p74 = scmp.ne.s32.totalorder %s63, %s64
      %p75 = scmp.eq.s32.totalorder %s17, 0
      %p76 = por %p74, %p75
      %p77 = scmp.ne.s32.totalorder %s63, %s64
      %p78 = scmp.eq.s32.totalorder %s18, 1
      %p79 = por %p77, %p78
      %p81 = scmp.ne.s32.totalorder %s64, %s80
      %p82 = scmp.eq.s32.totalorder %s18, 0
      %p83 = por %p81, %p82
      %s84 = ssub.s32 %s19, %s31
      %p85 = scmp.eq.s32.totalorder %s84, 0
      %s87 = sadd.s32 %s86, 1
      %s88 = scalar_select %p85, %s86, %s87
      %p91 = pneg %p85
      %p92 = scmp.eq.s32.totalorder %s12, 1
      %p93 = por %p91, %p92
      %p94 = scmp.ne.s32.totalorder %s86, %s89
      %p95 = scmp.eq.s32.totalorder %s12, 0
      %p96 = por %p94, %p95
      %p97 = scmp.ne.s32.totalorder %s86, %s89
      %p98 = scmp.eq.s32.totalorder %s17, 1
      %p99 = por %p97, %p98
      %p100 = scmp.ne.s32.totalorder %s89, %s90
      %p101 = scmp.eq.s32.totalorder %s17, 0
      %p102 = por %p100, %p101
      %p103 = scmp.ne.s32.totalorder %s89, %s90
      %p104 = scmp.eq.s32.totalorder %s18, 1
      %p105 = por %p103, %p104
      %p107 = scmp.ne.s32.totalorder %s90, %s106
      %p108 = scmp.eq.s32.totalorder %s18, 0
      %p109 = por %p107, %p108
      %s110 = ssub.s32 %s19, %s31
      %s111 = ssub.s32 %s20, %s27
      %s112 = sor.u32 %s110, %s111
      %p113 = scmp.eq.s32.totalorder %s112, 0
      %s115 = sadd.s32 %s114, 1
      %s116 = scalar_select %p113, %s114, %s115
      %p119 = pneg %p113
      %p120 = scmp.eq.s32.totalorder %s12, 1
      %p121 = por %p119, %p120
      %p122 = scmp.ne.s32.totalorder %s114, %s117
      %p123 = scmp.eq.s32.totalorder %s12, 0
      %p124 = por %p122, %p123
      %p125 = scmp.ne.s32.totalorder %s114, %s117
      %p126 = scmp.eq.s32.totalorder %s17, 1
      %p127 = por %p125, %p126
      %p128 = scmp.ne.s32.totalorder %s117, %s118
      %p129 = scmp.eq.s32.totalorder %s17, 0
      %p130 = por %p128, %p129
      %p131 = scmp.ne.s32.totalorder %s117, %s118
      %p132 = scmp.eq.s32.totalorder %s18, 1
      %p133 = por %p131, %p132
      %p135 = scmp.ne.s32.totalorder %s118, %s134
      %p136 = scmp.eq.s32.totalorder %s18, 0
      %p137 = por %p135, %p136
      %p138 = scmp.le.s32.totalorder 1, %s12
      %p139 = scmp.lt.s32.totalorder %s12, 3
      %p140 = pnand %p138, %p139
      %p141 = pneg %p140
      // Predicated region
      $region9: #{tpu_custom_call.1} parent=5 // pred_check
        _
      $region10: #{tpu_custom_call.1} parent=5 // pred_check_branch
        %143 = sbr.rel (%p140) target = $region12
      $region11: #{tpu_custom_call.1} parent=5 // pred_region
        %s144 = ssub.s32 %s12, 1
        // Predicated region
        $region13: #{tpu_custom_call.1} parent=11 // pred_check
          %p145 = pneg %p50
        $region14: #{tpu_custom_call.1} parent=11 // pred_check_branch
          %147 = sbr.rel (%p145) target = $region16
        $region15: #{tpu_custom_call.1} parent=11 // pred_region
          %s148 = smul.u32 2, %s22
          %p149 = scmp.lt.s32.totalorder %s148, 1
          %s150 = scalar_select %p149, %s148, 1
          %s151 = smul.addr %s150, 8
          %s152 = scalar_lea.vmem %s0, %s151
          %s153 = smul.u32 2, %s22
        $region16: #{tpu_custom_call.1} parent=11 // pred_fallthru
          _
      $region12: #{tpu_custom_call.1} parent=5 // pred_fallthru
        _
      %p154 = scmp.lt.s32.totalorder %s12, 2
      // Predicated region
      $region17: #{tpu_custom_call.1} parent=5 // pred_check
        %p155 = pneg %p154
      $region18: #{tpu_custom_call.1} parent=5 // pred_check_branch
        %157 = sbr.rel (%p155) target = $region20
      $region19: #{tpu_custom_call.1} parent=5 // pred_region
        // Predicated region
        $region21: #{tpu_custom_call.1} parent=19 // pred_check
          %p158 = pneg %p70
        $region22: #{tpu_custom_call.1} parent=19 // pred_check_branch
          %160 = sbr.rel (%p158) target = $region24
        $region23: #{tpu_custom_call.1} parent=19 // pred_region
          %p161 = scmp.lt.s32.totalorder %s19, 1
          %s162 = scalar_select %p161, %s19, 1
          %s163 = smul.addr %s162, 2
          %s164 = smul.addr %s163, 8
          %s165 = scalar_lea.vmem %s1, %s164
        $region24: #{tpu_custom_call.1} parent=19 // pred_fallthru
          _
        // Predicated region
        $region25: #{tpu_custom_call.1} parent=19 // pred_check
          %p166 = pneg %p96
        $region26: #{tpu_custom_call.1} parent=19 // pred_check_branch
          %168 = sbr.rel (%p166) target = $region28
        $region27: #{tpu_custom_call.1} parent=19 // pred_region
          %p169 = scmp.lt.s32.totalorder %s19, 1
          %s170 = scalar_select %p169, %s19, 1
          %s171 = smul.addr %s170, 2
          %s172 = smul.addr %s171, 8
          %s173 = scalar_lea.vmem %s2, %s172
        $region28: #{tpu_custom_call.1} parent=19 // pred_fallthru
          _
      $region20: #{tpu_custom_call.1} parent=5 // pred_fallthru
        _
      %p174 = scmp.le.s32.totalorder 1, %s12
      %p175 = scmp.lt.s32.totalorder %s12, 3
      %p176 = pnand %p174, %p175
      %p177 = pneg %p176
      // Predicated region
      $region29: #{tpu_custom_call.1} parent=5 // pred_check
        _
      $region30: #{tpu_custom_call.1} parent=5 // pred_check_branch
        %179 = sbr.rel (%p176) target = $region32
      $region31: #{tpu_custom_call.1} parent=5 // pred_region
        %s180 = ssub.s32 %s12, 1
        %s181 = smul.u32 2, %s22
        %p182 = scmp.lt.s32.totalorder %s181, 1
        %s183 = scalar_select %p182, %s181, 1
        %s184 = smul.addr %s183, 8
        %s185 = scalar_lea.vmem %s0, %s184
        %p186 = pneg %p50
        %p187 = pneg %p47
        %p188 = scmp.lt.s32.totalorder %s21, 1
        %s189 = scalar_select %p188, %s21, 1
        %s190 = smul.addr %s189, 2
        %s191 = smul.addr %s190, 8
        %s192 = scalar_lea.vmem %s1, %s191
        %p193 = pneg %p76
        %p194 = pneg %p73
        %p195 = scmp.lt.s32.totalorder %s21, 1
        %s196 = scalar_select %p195, %s21, 1
        %s197 = smul.addr %s196, 2
        %s198 = smul.addr %s197, 8
        %s199 = scalar_lea.vmem %s2, %s198
        %p200 = pneg %p102
        %p201 = pneg %p99
        %p202 = pneg %p130
        %p203 = pneg %p127
        %s204 = sand.u32 %s117, 1
        %s205 = scalar_lea.sflag [#allocation3], %s204
        %s206 = sand.u32 %s117, 1
        %s207 = smul.addr %s206, 32
        %s208 = scalar_lea.vmem [#allocation2], %s207
        %s209 = smul.u32 2, %s22
        %p210 = scmp.lt.s32.totalorder %s209, 1
        %s211 = scalar_select %p210, %s209, 1
        %s212 = smul.addr %s211, 8
        %s213 = scalar_lea.vmem %s0, %s212
        %s214 = smul.u32 2, %s22
        %p215 = scmp.lt.s32.totalorder %s21, 1
        %s216 = scalar_select %p215, %s21, 1
        %s217 = smul.addr %s216, 2
        %s218 = smul.addr %s217, 8
        %s219 = scalar_lea.vmem %s1, %s218
        %p220 = scmp.lt.s32.totalorder %s21, 1
        %s221 = scalar_select %p220, %s21, 1
        %s222 = smul.addr %s221, 2
        %s223 = smul.addr %s222, 8
        %s224 = scalar_lea.vmem %s2, %s223
        %s225 = smul.u32 2, %s22
        %v226 = vld [vmem:[%s224] sm:$0xff]
        %v227 = vld [vmem:[%s224 + $0x8] sm:$0xff]
        %v228 = vld [vmem:[%s219] sm:$0xff]
        %v229 = vld [vmem:[%s219 + $0x8] sm:$0xff]
        %v230 = vld [vmem:[%s213] sm:$0xff]
        %v231 = vld [vmem:[%s213 + $0x8] sm:$0xff]
        %vm232 = vcmask 64512
        %v234 = vsel %vm232, %v228, 0
        %v237 = vsel %vm232, %v229, 0
        %239 = vmatpush.msra.mxu0 0.0
        %240 = vmatpush.msra.mxu0 0.0
        %241 = vmatpush.msra.mxu0 0.0
        %242 = vmatpush.msra.mxu0 0.0
        %243 = vmatpush.msra.mxu0 0.0
        %244 = vmatpush.msra.mxu0 0.0
        %245 = vmatpush.msra.mxu0 0.0
        %246 = vmatpush.msra.mxu0 0.0
        %247 = vmatpush.msra.mxu0 0.0
        %248 = vmatpush.msra.mxu0 0.0
        %249 = vmatpush.msra.mxu0 0.0
        %250 = vmatpush.msra.mxu0 0.0
        %251 = vmatpush.msra.mxu0 0.0
        %252 = vmatpush.msra.mxu0 0.0
        %253 = vmatpush.msra.mxu0 0.0
        %254 = vmatpush.msra.mxu0 %v230
        %255 = vmatmul.f32.gmra.mxu0 %v234
        %v256 = vpop.f32.mrf.mxu0
        %v257 = vadd.f32 0.0, %v256
        %258 = vmatmul.f32.gmra.mxu0 %v237
        %v259 = vpop.f32.mrf.mxu0
        %v260 = vadd.f32 0.0, %v259
        %261 = vdwg.mxu0
        %262 = vmatpush.msra.mxu0 0.0
        %263 = vmatpush.msra.mxu0 0.0
        %264 = vmatpush.msra.mxu0 0.0
        %265 = vmatpush.msra.mxu0 0.0
        %266 = vmatpush.msra.mxu0 0.0
        %267 = vmatpush.msra.mxu0 0.0
        %268 = vmatpush.msra.mxu0 0.0
        %269 = vmatpush.msra.mxu0 0.0
        %270 = vmatpush.msra.mxu0 0.0
        %271 = vmatpush.msra.mxu0 0.0
        %272 = vmatpush.msra.mxu0 0.0
        %273 = vmatpush.msra.mxu0 0.0
        %274 = vmatpush.msra.mxu0 0.0
        %275 = vmatpush.msra.mxu0 0.0
        %276 = vmatpush.msra.mxu0 0.0
        %277 = vmatpush.msra.mxu0 %v231
        %278 = vmatmul.f32.gmra.mxu0 %v234
        %v279 = vpop.f32.mrf.mxu0
        %v280 = vadd.f32 0.0, %v279
        %281 = vmatmul.f32.gmra.mxu0 %v237
        %v282 = vpop.f32.mrf.mxu0
        %v283 = vadd.f32 0.0, %v282
        %284 = vdwg.mxu0
        %v285 = vand.u32 2147483647, %v257
        %vm286 = vcmp.le.f32.partialorder %v285, 0.7853982
        %vm287 = vcmp.lt.s32.totalorder %v257, 0
        %v288 = vand.u32 %v257, 2139095040
        %v289 = vshrl.u32 %v288, 23
        %v290 = vsub.s32 %v289, 127
        %v291 = vand.u32 2147483647, %v257
        %v292 = vand.u32 %v291, 8388607
        %v293 = vor.u32 %v292, 8388608
        %v294 = vsub.s32 0, %v293
        %v295 = vadd.s32 %v290, 1
        %vm296 = vcmp.gt.s32.totalorder %v295, 0
        %v297 = vsel %vm296, %v295, 0
        %v298 = vshrl.u32 %v297, 5
        %v299 = vand.u32 %v297, 31
        %v300 = vsub.s32 32, %v299
        %v301 = vshrl.u32 683565275, %v300
        %v302 = vshll.u32 683565275, %v299
        %v303 = vshrl.u32 2475754826, %v300
        %v304 = vor.u32 %v302, %v303
        %v305 = vshll.u32 2475754826, %v299
        %v306 = vshrl.u32 2131351028, %v300
        %v307 = vor.u32 %v305, %v306
        %v308 = vshll.u32 2131351028, %v299
        %v309 = vshrl.u32 2102212464, %v300
        %v310 = vor.u32 %v308, %v309
        %v311 = vshll.u32 2102212464, %v299
        %v312 = vshrl.u32 920167782, %v300
        %v313 = vor.u32 %v311, %v312
        %v314 = vshll.u32 920167782, %v299
        %v315 = vshrl.u32 1326507024, %v300
        %v316 = vor.u32 %v314, %v315
        %vm317 = vcmp.lt.s32.totalorder %v298, 1
        %vm318 = vcmp.lt.s32.totalorder %v298, 2
        %vm319 = vcmp.lt.s32.totalorder %v298, 3
        %vm320 = vcmp.lt.s32.totalorder %v298, 4
        %v321 = vsel %vm317, %v301, %v304
        %v322 = vsel %vm320, %v310, 2102212464
        %v323 = vsel %vm319, %v307, %v322
        %v324 = vsel %vm318, %v321, %v323
        %v325 = vsel %vm317, %v304, %v307
        %v326 = vsel %vm320, %v313, 920167782
        %v327 = vsel %vm319, %v310, %v326
        %v328 = vsel %vm318, %v325, %v327
        %v329 = vsel %vm317, %v307, %v310
        %v330 = vsel %vm320, %v316, 1326507024
        %v331 = vsel %vm319, %v313, %v330
        %v332 = vsel %vm318, %v329, %v331
        %v333 = vshll.u32 %v293, 8
        %v334 = vand.u32 %v333, 65535
        %v335 = vshrl.u32 %v333, 16
        %v336 = vand.u32 %v332, 65535
        %v337 = vshrl.u32 %v332, 16
        %v338 = vmul.u32 %v334, %v336
        %v339 = vmul.u32 %v334, %v337
        %v340 = vmul.u32 %v335, %v336
        %v341 = vmul.u32 %v335, %v337
        %v342 = vshll.u32 %v339, 16
        %v343 = vshrl.u32 %v339, 16
        %v344 = vshll.u32 %v340, 16
        %v345 = vshrl.u32 %v340, 16
        %vm346 = vc.u32 %v338, %v342
        %v347 = vsel %vm346, 1, 0
        %v348 = vadd.s32 %v338, %v342
        %v349 = vadd.s32 %v341, %v347
        %vm350 = vc.u32 %v348, %v344
        %v351 = vsel %vm350, 1, 0
        %v352 = vadd.s32 %v348, %v344
        %v353 = vadd.s32 %v349, %v351
        %v354 = vadd.s32 %v353, %v343
        %v355 = vadd.s32 %v354, %v345
        %v356 = vand.u32 %v333, 65535
        %v357 = vshrl.u32 %v333, 16
        %v358 = vand.u32 %v328, 65535
        %v359 = vshrl.u32 %v328, 16
        %v360 = vmul.u32 %v356, %v358
        %v361 = vmul.u32 %v356, %v359
        %v362 = vmul.u32 %v357, %v358
        %v363 = vmul.u32 %v357, %v359
        %v364 = vshll.u32 %v361, 16
        %v365 = vshrl.u32 %v361, 16
        %v366 = vshll.u32 %v362, 16
        %v367 = vshrl.u32 %v362, 16
        %vm368 = vc.u32 %v360, %v364
        %v369 = vsel %vm368, 1, 0
        %v370 = vadd.s32 %v360, %v364
        %v371 = vadd.s32 %v363, %v369
        %vm372 = vc.u32 %v370, %v366
        %v373 = vsel %vm372, 1, 0
        %v374 = vadd.s32 %v370, %v366
        %v375 = vadd.s32 %v371, %v373
        %v376 = vadd.s32 %v375, %v365
        %v377 = vadd.s32 %v376, %v367
        %v378 = vmul.u32 %v333, %v324
        %v379 = vadd.s32 %v355, %v374
        %vm380 = vc.u32 %v355, %v374
        %v381 = vadd.s32 %v377, 1
        %v382 = vsel %vm380, %v381, %v377
        %v383 = vadd.s32 %v378, %v382
        %v384 = vadd.s32 %v383, 536870912
        %v385 = vshrl.u32 %v384, 30
        %v386 = vshll.u32 %v385, 30
        %v387 = vsub.s32 %v383, %v386
        %vm388 = vcmp.lt.s32.totalorder %v387, 0
        %v389 = vsub.s32 0, %v387
        %v390 = vsel %vm388, %v389, %v387
        %v391 = vclz %v390
        %v392 = vsub.s32 %v391, 2
        %vm393 = vcmp.gt.s32.totalorder 0, %v392
        %v394 = vsel %vm393, 0, %v392
        %v395 = vsub.s32 32, %v394
        %v396 = vshll.u32 %v387, %v394
        %v397 = vshrl.u32 %v379, %v395
        %v398 = vor.u32 %v396, %v397
        %v399 = vsub.s32 4294967266, %v394
        %v400 = vadd.s32 %v399, 127
        %v401 = vshll.u32 %v400, 23
        %v402 = vor.u32 4788187, %v401
        %v403 = vand.u32 2147483647, %v402
        %v405 = vcvt.s32.f32 %v398
        %v406 = vmul.f32 %v405, %v403
        %v407 = vxor.u32 %v406, 2147483648
        %v408 = vsel %vm287, %v407, %v406
        %v409 = vsub.s32 4, %v385
        %v410 = vsel %vm287, %v409, %v385
        %v411 = vsel %vm286, %v257, %v408
        %v412 = vsel %vm286, 0, %v410
        %v413 = vmul.f32 %v411, %v411
        %v414 = vmul.f32 %v413, -0.001358992
        %v415 = vadd.f32 %v414, 0.041655596
        %v416 = vmul.f32 %v413, %v415
        %v417 = vadd.f32 %v416, -0.4999988
        %v418 = vmul.f32 %v413, %v417
        %v419 = vadd.f32 1.0, %v418
        %v420 = vmul.f32 %v411, %v411
        %v421 = vmul.f32 %v420, -0.00019511016
        %v422 = vadd.f32 %v421, 0.008332121
        %v423 = vmul.f32 %v420, %v422
        %v424 = vadd.f32 %v423, -0.16666654
        %v425 = vmul.f32 %v420, %v424
        %v426 = vadd.f32 %v425, 1.0
        %v427 = vmul.f32 %v426, %v411
        %vm428 = vweird.f32 %v257
        %v429 = vadd.s32 %v412, 3
        %v430 = vand.u32 %v429, 3
        %vm431 = vcmp.lt.s32.totalorder %v430, 2
        %vm432 = vcmp.eq.s32.totalorder %v430, 0
        %v433 = vxor.u32 %v427, 2147483648
        %v434 = vsel %vm432, %v419, %v433
        %vm435 = vcmp.eq.s32.totalorder %v430, 2
        %v436 = vxor.u32 %v419, 2147483648
        %v437 = vsel %vm435, %v436, %v427
        %v438 = vsel %vm431, %v434, %v437
        %v439 = vsel %vm428, nan, %v438
        %v440 = vand.u32 2147483647, %v280
        %vm441 = vcmp.le.f32.partialorder %v440, 0.7853982
        %vm442 = vcmp.lt.s32.totalorder %v280, 0
        %v443 = vand.u32 %v280, 2139095040
        %v444 = vshrl.u32 %v443, 23
        %v445 = vsub.s32 %v444, 127
        %v446 = vand.u32 2147483647, %v280
        %v447 = vand.u32 %v446, 8388607
        %v448 = vor.u32 %v447, 8388608
        %v449 = vsub.s32 0, %v448
        %v450 = vadd.s32 %v445, 1
        %vm451 = vcmp.gt.s32.totalorder %v450, 0
        %v452 = vsel %vm451, %v450, 0
        %v453 = vshrl.u32 %v452, 5
        %v454 = vand.u32 %v452, 31
        %v455 = vsub.s32 32, %v454
        %v456 = vshrl.u32 683565275, %v455
        %v457 = vshll.u32 683565275, %v454
        %v458 = vshrl.u32 2475754826, %v455
        %v459 = vor.u32 %v457, %v458
        %v460 = vshll.u32 2475754826, %v454
        %v461 = vshrl.u32 2131351028, %v455
        %v462 = vor.u32 %v460, %v461
        %v463 = vshll.u32 2131351028, %v454
        %v464 = vshrl.u32 2102212464, %v455
        %v465 = vor.u32 %v463, %v464
        %v466 = vshll.u32 2102212464, %v454
        %v467 = vshrl.u32 920167782, %v455
        %v468 = vor.u32 %v466, %v467
        %v469 = vshll.u32 920167782, %v454
        %v470 = vshrl.u32 1326507024, %v455
        %v471 = vor.u32 %v469, %v470
        %vm472 = vcmp.lt.s32.totalorder %v453, 1
        %vm473 = vcmp.lt.s32.totalorder %v453, 2
        %vm474 = vcmp.lt.s32.totalorder %v453, 3
        %vm475 = vcmp.lt.s32.totalorder %v453, 4
        %v476 = vsel %vm472, %v456, %v459
        %v477 = vsel %vm475, %v465, 2102212464
        %v478 = vsel %vm474, %v462, %v477
        %v479 = vsel %vm473, %v476, %v478
        %v480 = vsel %vm472, %v459, %v462
        %v481 = vsel %vm475, %v468, 920167782
        %v482 = vsel %vm474, %v465, %v481
        %v483 = vsel %vm473, %v480, %v482
        %v484 = vsel %vm472, %v462, %v465
        %v485 = vsel %vm475, %v471, 1326507024
        %v486 = vsel %vm474, %v468, %v485
        %v487 = vsel %vm473, %v484, %v486
        %v488 = vshll.u32 %v448, 8
        %v489 = vand.u32 %v488, 65535
        %v490 = vshrl.u32 %v488, 16
        %v491 = vand.u32 %v487, 65535
        %v492 = vshrl.u32 %v487, 16
        %v493 = vmul.u32 %v489, %v491
        %v494 = vmul.u32 %v489, %v492
        %v495 = vmul.u32 %v490, %v491
        %v496 = vmul.u32 %v490, %v492
        %v497 = vshll.u32 %v494, 16
        %v498 = vshrl.u32 %v494, 16
        %v499 = vshll.u32 %v495, 16
        %v500 = vshrl.u32 %v495, 16
        %vm501 = vc.u32 %v493, %v497
        %v502 = vsel %vm501, 1, 0
        %v503 = vadd.s32 %v493, %v497
        %v504 = vadd.s32 %v496, %v502
        %vm505 = vc.u32 %v503, %v499
        %v506 = vsel %vm505, 1, 0
        %v507 = vadd.s32 %v503, %v499
        %v508 = vadd.s32 %v504, %v506
        %v509 = vadd.s32 %v508, %v498
        %v510 = vadd.s32 %v509, %v500
        %v511 = vand.u32 %v488, 65535
        %v512 = vshrl.u32 %v488, 16
        %v513 = vand.u32 %v483, 65535
        %v514 = vshrl.u32 %v483, 16
        %v515 = vmul.u32 %v511, %v513
        %v516 = vmul.u32 %v511, %v514
        %v517 = vmul.u32 %v512, %v513
        %v518 = vmul.u32 %v512, %v514
        %v519 = vshll.u32 %v516, 16
        %v520 = vshrl.u32 %v516, 16
        %v521 = vshll.u32 %v517, 16
        %v522 = vshrl.u32 %v517, 16
        %vm523 = vc.u32 %v515, %v519
        %v524 = vsel %vm523, 1, 0
        %v525 = vadd.s32 %v515, %v519
        %v526 = vadd.s32 %v518, %v524
        %vm527 = vc.u32 %v525, %v521
        %v528 = vsel %vm527, 1, 0
        %v529 = vadd.s32 %v525, %v521
        %v530 = vadd.s32 %v526, %v528
        %v531 = vadd.s32 %v530, %v520
        %v532 = vadd.s32 %v531, %v522
        %v533 = vmul.u32 %v488, %v479
        %v534 = vadd.s32 %v510, %v529
        %vm535 = vc.u32 %v510, %v529
        %v536 = vadd.s32 %v532, 1
        %v537 = vsel %vm535, %v536, %v532
        %v538 = vadd.s32 %v533, %v537
        %v539 = vadd.s32 %v538, 536870912
        %v540 = vshrl.u32 %v539, 30
        %v541 = vshll.u32 %v540, 30
        %v542 = vsub.s32 %v538, %v541
        %vm543 = vcmp.lt.s32.totalorder %v542, 0
        %v544 = vsub.s32 0, %v542
        %v545 = vsel %vm543, %v544, %v542
        %v546 = vclz %v545
        %v547 = vsub.s32 %v546, 2
        %vm548 = vcmp.gt.s32.totalorder 0, %v547
        %v549 = vsel %vm548, 0, %v547
        %v550 = vsub.s32 32, %v549
        %v551 = vshll.u32 %v542, %v549
        %v552 = vshrl.u32 %v534, %v550
        %v553 = vor.u32 %v551, %v552
        %v554 = vsub.s32 4294967266, %v549
        %v555 = vadd.s32 %v554, 127
        %v556 = vshll.u32 %v555, 23
        %v557 = vor.u32 4788187, %v556
        %v558 = vand.u32 2147483647, %v557
        %v560 = vcvt.s32.f32 %v553
        %v561 = vmul.f32 %v560, %v558
        %v562 = vxor.u32 %v561, 2147483648
        %v563 = vsel %vm442, %v562, %v561
        %v564 = vsub.s32 4, %v540
        %v565 = vsel %vm442, %v564, %v540
        %v566 = vsel %vm441, %v280, %v563
        %v567 = vsel %vm441, 0, %v565
        %v568 = vmul.f32 %v566, %v566
        %v569 = vmul.f32 %v568, -0.001358992
        %v570 = vadd.f32 %v569, 0.041655596
        %v571 = vmul.f32 %v568, %v570
        %v572 = vadd.f32 %v571, -0.4999988
        %v573 = vmul.f32 %v568, %v572
        %v574 = vadd.f32 1.0, %v573
        %v575 = vmul.f32 %v566, %v566
        %v576 = vmul.f32 %v575, -0.00019511016
        %v577 = vadd.f32 %v576, 0.008332121
        %v578 = vmul.f32 %v575, %v577
        %v579 = vadd.f32 %v578, -0.16666654
        %v580 = vmul.f32 %v575, %v579
        %v581 = vadd.f32 %v580, 1.0
        %v582 = vmul.f32 %v581, %v566
        %vm583 = vweird.f32 %v280
        %v584 = vadd.s32 %v567, 3
        %v585 = vand.u32 %v584, 3
        %vm586 = vcmp.lt.s32.totalorder %v585, 2
        %vm587 = vcmp.eq.s32.totalorder %v585, 0
        %v588 = vxor.u32 %v582, 2147483648
        %v589 = vsel %vm587, %v574, %v588
        %vm590 = vcmp.eq.s32.totalorder %v585, 2
        %v591 = vxor.u32 %v574, 2147483648
        %v592 = vsel %vm590, %v591, %v582
        %v593 = vsel %vm586, %v589, %v592
        %v594 = vsel %vm583, nan, %v593
        %v595 = vand.u32 2147483647, %v260
        %vm596 = vcmp.le.f32.partialorder %v595, 0.7853982
        %vm597 = vcmp.lt.s32.totalorder %v260, 0
        %v598 = vand.u32 %v260, 2139095040
        %v599 = vshrl.u32 %v598, 23
        %v600 = vsub.s32 %v599, 127
        %v601 = vand.u32 2147483647, %v260
        %v602 = vand.u32 %v601, 8388607
        %v603 = vor.u32 %v602, 8388608
        %v604 = vsub.s32 0, %v603
        %v605 = vadd.s32 %v600, 1
        %vm606 = vcmp.gt.s32.totalorder %v605, 0
        %v607 = vsel %vm606, %v605, 0
        %v608 = vshrl.u32 %v607, 5
        %v609 = vand.u32 %v607, 31
        %v610 = vsub.s32 32, %v609
        %v611 = vshrl.u32 683565275, %v610
        %v612 = vshll.u32 683565275, %v609
        %v613 = vshrl.u32 2475754826, %v610
        %v614 = vor.u32 %v612, %v613
        %v615 = vshll.u32 2475754826, %v609
        %v616 = vshrl.u32 2131351028, %v610
        %v617 = vor.u32 %v615, %v616
        %v618 = vshll.u32 2131351028, %v609
        %v619 = vshrl.u32 2102212464, %v610
        %v620 = vor.u32 %v618, %v619
        %v621 = vshll.u32 2102212464, %v609
        %v622 = vshrl.u32 920167782, %v610
        %v623 = vor.u32 %v621, %v622
        %v624 = vshll.u32 920167782, %v609
        %v625 = vshrl.u32 1326507024, %v610
        %v626 = vor.u32 %v624, %v625
        %vm627 = vcmp.lt.s32.totalorder %v608, 1
        %vm628 = vcmp.lt.s32.totalorder %v608, 2
        %vm629 = vcmp.lt.s32.totalorder %v608, 3
        %vm630 = vcmp.lt.s32.totalorder %v608, 4
        %v631 = vsel %vm627, %v611, %v614
        %v632 = vsel %vm630, %v620, 2102212464
        %v633 = vsel %vm629, %v617, %v632
        %v634 = vsel %vm628, %v631, %v633
        %v635 = vsel %vm627, %v614, %v617
        %v636 = vsel %vm630, %v623, 920167782
        %v637 = vsel %vm629, %v620, %v636
        %v638 = vsel %vm628, %v635, %v637
        %v639 = vsel %vm627, %v617, %v620
        %v640 = vsel %vm630, %v626, 1326507024
        %v641 = vsel %vm629, %v623, %v640
        %v642 = vsel %vm628, %v639, %v641
        %v643 = vshll.u32 %v603, 8
        %v644 = vand.u32 %v643, 65535
        %v645 = vshrl.u32 %v643, 16
        %v646 = vand.u32 %v642, 65535
        %v647 = vshrl.u32 %v642, 16
        %v648 = vmul.u32 %v644, %v646
        %v649 = vmul.u32 %v644, %v647
        %v650 = vmul.u32 %v645, %v646
        %v651 = vmul.u32 %v645, %v647
        %v652 = vshll.u32 %v649, 16
        %v653 = vshrl.u32 %v649, 16
        %v654 = vshll.u32 %v650, 16
        %v655 = vshrl.u32 %v650, 16
        %vm656 = vc.u32 %v648, %v652
        %v657 = vsel %vm656, 1, 0
        %v658 = vadd.s32 %v648, %v652
        %v659 = vadd.s32 %v651, %v657
        %vm660 = vc.u32 %v658, %v654
        %v661 = vsel %vm660, 1, 0
        %v662 = vadd.s32 %v658, %v654
        %v663 = vadd.s32 %v659, %v661
        %v664 = vadd.s32 %v663, %v653
        %v665 = vadd.s32 %v664, %v655
        %v666 = vand.u32 %v643, 65535
        %v667 = vshrl.u32 %v643, 16
        %v668 = vand.u32 %v638, 65535
        %v669 = vshrl.u32 %v638, 16
        %v670 = vmul.u32 %v666, %v668
        %v671 = vmul.u32 %v666, %v669
        %v672 = vmul.u32 %v667, %v668
        %v673 = vmul.u32 %v667, %v669
        %v674 = vshll.u32 %v671, 16
        %v675 = vshrl.u32 %v671, 16
        %v676 = vshll.u32 %v672, 16
        %v677 = vshrl.u32 %v672, 16
        %vm678 = vc.u32 %v670, %v674
        %v679 = vsel %vm678, 1, 0
        %v680 = vadd.s32 %v670, %v674
        %v681 = vadd.s32 %v673, %v679
        %vm682 = vc.u32 %v680, %v676
        %v683 = vsel %vm682, 1, 0
        %v684 = vadd.s32 %v680, %v676
        %v685 = vadd.s32 %v681, %v683
        %v686 = vadd.s32 %v685, %v675
        %v687 = vadd.s32 %v686, %v677
        %v688 = vmul.u32 %v643, %v634
        %v689 = vadd.s32 %v665, %v684
        %vm690 = vc.u32 %v665, %v684
        %v691 = vadd.s32 %v687, 1
        %v692 = vsel %vm690, %v691, %v687
        %v693 = vadd.s32 %v688, %v692
        %v694 = vadd.s32 %v693, 536870912
        %v695 = vshrl.u32 %v694, 30
        %v696 = vshll.u32 %v695, 30
        %v697 = vsub.s32 %v693, %v696
        %vm698 = vcmp.lt.s32.totalorder %v697, 0
        %v699 = vsub.s32 0, %v697
        %v700 = vsel %vm698, %v699, %v697
        %v701 = vclz %v700
        %v702 = vsub.s32 %v701, 2
        %vm703 = vcmp.gt.s32.totalorder 0, %v702
        %v704 = vsel %vm703, 0, %v702
        %v705 = vsub.s32 32, %v704
        %v706 = vshll.u32 %v697, %v704
        %v707 = vshrl.u32 %v689, %v705
        %v708 = vor.u32 %v706, %v707
        %v709 = vsub.s32 4294967266, %v704
        %v710 = vadd.s32 %v709, 127
        %v711 = vshll.u32 %v710, 23
        %v712 = vor.u32 4788187, %v711
        %v713 = vand.u32 2147483647, %v712
        %v715 = vcvt.s32.f32 %v708
        %v716 = vmul.f32 %v715, %v713
        %v717 = vxor.u32 %v716, 2147483648
        %v718 = vsel %vm597, %v717, %v716
        %v719 = vsub.s32 4, %v695
        %v720 = vsel %vm597, %v719, %v695
        %v721 = vsel %vm596, %v260, %v718
        %v722 = vsel %vm596, 0, %v720
        %v723 = vmul.f32 %v721, %v721
        %v724 = vmul.f32 %v723, -0.001358992
        %v725 = vadd.f32 %v724, 0.041655596
        %v726 = vmul.f32 %v723, %v725
        %v727 = vadd.f32 %v726, -0.4999988
        %v728 = vmul.f32 %v723, %v727
        %v729 = vadd.f32 1.0, %v728
        %v730 = vmul.f32 %v721, %v721
        %v731 = vmul.f32 %v730, -0.00019511016
        %v732 = vadd.f32 %v731, 0.008332121
        %v733 = vmul.f32 %v730, %v732
        %v734 = vadd.f32 %v733, -0.16666654
        %v735 = vmul.f32 %v730, %v734
        %v736 = vadd.f32 %v735, 1.0
        %v737 = vmul.f32 %v736, %v721
        %vm738 = vweird.f32 %v260
        %v739 = vadd.s32 %v722, 3
        %v740 = vand.u32 %v739, 3
        %vm741 = vcmp.lt.s32.totalorder %v740, 2
        %vm742 = vcmp.eq.s32.totalorder %v740, 0
        %v743 = vxor.u32 %v737, 2147483648
        %v744 = vsel %vm742, %v729, %v743
        %vm745 = vcmp.eq.s32.totalorder %v740, 2
        %v746 = vxor.u32 %v729, 2147483648
        %v747 = vsel %vm745, %v746, %v737
        %v748 = vsel %vm741, %v744, %v747
        %v749 = vsel %vm738, nan, %v748
        %v750 = vand.u32 2147483647, %v283
        %vm751 = vcmp.le.f32.partialorder %v750, 0.7853982
        %vm752 = vcmp.lt.s32.totalorder %v283, 0
        %v753 = vand.u32 %v283, 2139095040
        %v754 = vshrl.u32 %v753, 23
        %v755 = vsub.s32 %v754, 127
        %v756 = vand.u32 2147483647, %v283
        %v757 = vand.u32 %v756, 8388607
        %v758 = vor.u32 %v757, 8388608
        %v759 = vsub.s32 0, %v758
        %v760 = vadd.s32 %v755, 1
        %vm761 = vcmp.gt.s32.totalorder %v760, 0
        %v762 = vsel %vm761, %v760, 0
        %v763 = vshrl.u32 %v762, 5
        %v764 = vand.u32 %v762, 31
        %v765 = vsub.s32 32, %v764
        %v766 = vshrl.u32 683565275, %v765
        %v767 = vshll.u32 683565275, %v764
        %v768 = vshrl.u32 2475754826, %v765
        %v769 = vor.u32 %v767, %v768
        %v770 = vshll.u32 2475754826, %v764
        %v771 = vshrl.u32 2131351028, %v765
        %v772 = vor.u32 %v770, %v771
        %v773 = vshll.u32 2131351028, %v764
        %v774 = vshrl.u32 2102212464, %v765
        %v775 = vor.u32 %v773, %v774
        %v776 = vshll.u32 2102212464, %v764
        %v777 = vshrl.u32 920167782, %v765
        %v778 = vor.u32 %v776, %v777
        %v779 = vshll.u32 920167782, %v764
        %v780 = vshrl.u32 1326507024, %v765
        %v781 = vor.u32 %v779, %v780
        %vm782 = vcmp.lt.s32.totalorder %v763, 1
        %vm783 = vcmp.lt.s32.totalorder %v763, 2
        %vm784 = vcmp.lt.s32.totalorder %v763, 3
        %vm785 = vcmp.lt.s32.totalorder %v763, 4
        %v786 = vsel %vm782, %v766, %v769
        %v787 = vsel %vm785, %v775, 2102212464
        %v788 = vsel %vm784, %v772, %v787
        %v789 = vsel %vm783, %v786, %v788
        %v790 = vsel %vm782, %v769, %v772
        %v791 = vsel %vm785, %v778, 920167782
        %v792 = vsel %vm784, %v775, %v791
        %v793 = vsel %vm783, %v790, %v792
        %v794 = vsel %vm782, %v772, %v775
        %v795 = vsel %vm785, %v781, 1326507024
        %v796 = vsel %vm784, %v778, %v795
        %v797 = vsel %vm783, %v794, %v796
        %v798 = vshll.u32 %v758, 8
        %v799 = vand.u32 %v798, 65535
        %v800 = vshrl.u32 %v798, 16
        %v801 = vand.u32 %v797, 65535
        %v802 = vshrl.u32 %v797, 16
        %v803 = vmul.u32 %v799, %v801
        %v804 = vmul.u32 %v799, %v802
        %v805 = vmul.u32 %v800, %v801
        %v806 = vmul.u32 %v800, %v802
        %v807 = vshll.u32 %v804, 16
        %v808 = vshrl.u32 %v804, 16
        %v809 = vshll.u32 %v805, 16
        %v810 = vshrl.u32 %v805, 16
        %vm811 = vc.u32 %v803, %v807
        %v812 = vsel %vm811, 1, 0
        %v813 = vadd.s32 %v803, %v807
        %v814 = vadd.s32 %v806, %v812
        %vm815 = vc.u32 %v813, %v809
        %v816 = vsel %vm815, 1, 0
        %v817 = vadd.s32 %v813, %v809
        %v818 = vadd.s32 %v814, %v816
        %v819 = vadd.s32 %v818, %v808
        %v820 = vadd.s32 %v819, %v810
        %v821 = vand.u32 %v798, 65535
        %v822 = vshrl.u32 %v798, 16
        %v823 = vand.u32 %v793, 65535
        %v824 = vshrl.u32 %v793, 16
        %v825 = vmul.u32 %v821, %v823
        %v826 = vmul.u32 %v821, %v824
        %v827 = vmul.u32 %v822, %v823
        %v828 = vmul.u32 %v822, %v824
        %v829 = vshll.u32 %v826, 16
        %v830 = vshrl.u32 %v826, 16
        %v831 = vshll.u32 %v827, 16
        %v832 = vshrl.u32 %v827, 16
        %vm833 = vc.u32 %v825, %v829
        %v834 = vsel %vm833, 1, 0
        %v835 = vadd.s32 %v825, %v829
        %v836 = vadd.s32 %v828, %v834
        %vm837 = vc.u32 %v835, %v831
        %v838 = vsel %vm837, 1, 0
        %v839 = vadd.s32 %v835, %v831
        %v840 = vadd.s32 %v836, %v838
        %v841 = vadd.s32 %v840, %v830
        %v842 = vadd.s32 %v841, %v832
        %v843 = vmul.u32 %v798, %v789
        %v844 = vadd.s32 %v820, %v839
        %vm845 = vc.u32 %v820, %v839
        %v846 = vadd.s32 %v842, 1
        %v847 = vsel %vm845, %v846, %v842
        %v848 = vadd.s32 %v843, %v847
        %v849 = vadd.s32 %v848, 536870912
        %v850 = vshrl.u32 %v849, 30
        %v851 = vshll.u32 %v850, 30
        %v852 = vsub.s32 %v848, %v851
        %vm853 = vcmp.lt.s32.totalorder %v852, 0
        %v854 = vsub.s32 0, %v852
        %v855 = vsel %vm853, %v854, %v852
        %v856 = vclz %v855
        %v857 = vsub.s32 %v856, 2
        %vm858 = vcmp.gt.s32.totalorder 0, %v857
        %v859 = vsel %vm858, 0, %v857
        %v860 = vsub.s32 32, %v859
        %v861 = vshll.u32 %v852, %v859
        %v862 = vshrl.u32 %v844, %v860
        %v863 = vor.u32 %v861, %v862
        %v864 = vsub.s32 4294967266, %v859
        %v865 = vadd.s32 %v864, 127
        %v866 = vshll.u32 %v865, 23
        %v867 = vor.u32 4788187, %v866
        %v868 = vand.u32 2147483647, %v867
        %v870 = vcvt.s32.f32 %v863
        %v871 = vmul.f32 %v870, %v868
        %v872 = vxor.u32 %v871, 2147483648
        %v873 = vsel %vm752, %v872, %v871
        %v874 = vsub.s32 4, %v850
        %v875 = vsel %vm752, %v874, %v850
        %v876 = vsel %vm751, %v283, %v873
        %v877 = vsel %vm751, 0, %v875
        %v878 = vmul.f32 %v876, %v876
        %v879 = vmul.f32 %v878, -0.001358992
        %v880 = vadd.f32 %v879, 0.041655596
        %v881 = vmul.f32 %v878, %v880
        %v882 = vadd.f32 %v881, -0.4999988
        %v883 = vmul.f32 %v878, %v882
        %v884 = vadd.f32 1.0, %v883
        %v885 = vmul.f32 %v876, %v876
        %v886 = vmul.f32 %v885, -0.00019511016
        %v887 = vadd.f32 %v886, 0.008332121
        %v888 = vmul.f32 %v885, %v887
        %v889 = vadd.f32 %v888, -0.16666654
        %v890 = vmul.f32 %v885, %v889
        %v891 = vadd.f32 %v890, 1.0
        %v892 = vmul.f32 %v891, %v876
        %vm893 = vweird.f32 %v283
        %v894 = vadd.s32 %v877, 3
        %v895 = vand.u32 %v894, 3
        %vm896 = vcmp.lt.s32.totalorder %v895, 2
        %vm897 = vcmp.eq.s32.totalorder %v895, 0
        %v898 = vxor.u32 %v892, 2147483648
        %v899 = vsel %vm897, %v884, %v898
        %vm900 = vcmp.eq.s32.totalorder %v895, 2
        %v901 = vxor.u32 %v884, 2147483648
        %v902 = vsel %vm900, %v901, %v892
        %v903 = vsel %vm896, %v899, %v902
        %v904 = vsel %vm893, nan, %v903
        %vm905 = vcmask 130048
        %v907 = vsel %vm905, %v226, 0
        %v910 = vsel %vm905, %v227, 0
        %912 = vmatpush.msra.mxu0 0.0
        %913 = vmatpush.msra.mxu0 0.0
        %914 = vmatpush.msra.mxu0 0.0
        %915 = vmatpush.msra.mxu0 0.0
        %916 = vmatpush.msra.mxu0 0.0
        %917 = vmatpush.msra.mxu0 0.0
        %918 = vmatpush.msra.mxu0 0.0
        %919 = vmatpush.msra.mxu0 0.0
        %920 = vmatpush.msra.mxu0 0.0
        %921 = vmatpush.msra.mxu0 0.0
        %922 = vmatpush.msra.mxu0 0.0
        %923 = vmatpush.msra.mxu0 0.0
        %924 = vmatpush.msra.mxu0 0.0
        %925 = vmatpush.msra.mxu0 0.0
        %926 = vmatpush.msra.mxu0 %v749
        %927 = vmatpush.msra.mxu0 %v439
        %928 = vmatmul.f32.gmra.mxu0 %v907
        %v929 = vpop.f32.mrf.mxu0
        %v930 = vadd.f32 0.0, %v929
        %931 = vmatmul.f32.gmra.mxu0 %v910
        %v932 = vpop.f32.mrf.mxu0
        %v933 = vadd.f32 0.0, %v932
        %934 = vdwg.mxu0
        %935 = vmatpush.msra.mxu0 0.0
        %936 = vmatpush.msra.mxu0 0.0
        %937 = vmatpush.msra.mxu0 0.0
        %938 = vmatpush.msra.mxu0 0.0
        %939 = vmatpush.msra.mxu0 0.0
        %940 = vmatpush.msra.mxu0 0.0
        %941 = vmatpush.msra.mxu0 0.0
        %942 = vmatpush.msra.mxu0 0.0
        %943 = vmatpush.msra.mxu0 0.0
        %944 = vmatpush.msra.mxu0 0.0
        %945 = vmatpush.msra.mxu0 0.0
        %946 = vmatpush.msra.mxu0 0.0
        %947 = vmatpush.msra.mxu0 0.0
        %948 = vmatpush.msra.mxu0 0.0
        %949 = vmatpush.msra.mxu0 %v904
        %950 = vmatpush.msra.mxu0 %v594
        %951 = vmatmul.f32.gmra.mxu0 %v907
        %v952 = vpop.f32.mrf.mxu0
        %v953 = vadd.f32 0.0, %v952
        %954 = vmatmul.f32.gmra.mxu0 %v910
        %v955 = vpop.f32.mrf.mxu0
        %v956 = vadd.f32 0.0, %v955
        %957 = vdwg.mxu0
        %958 = vst [vmem:[%s208] sm:$0xff] %v930
        %959 = vst [vmem:[%s208 + $0x8] sm:$0xff] %v953
        %960 = vst [vmem:[%s208 + $0x10] sm:$0xff] %v933
        %961 = vst [vmem:[%s208 + $0x18] sm:$0xff] %v956
        %s962 = sand.u32 %s117, 1
        %s963 = scalar_lea.sflag [#allocation3], %s962
        %s964 = sand.u32 %s117, 1
        %s965 = smul.addr %s964, 32
        %s966 = scalar_lea.vmem [#allocation2], %s965
        // Predicated region
        $region33: #{tpu_custom_call.1} parent=31 // pred_check
          %p967 = pneg %p127
        $region34: #{tpu_custom_call.1} parent=31 // pred_check_branch
          %969 = sbr.rel (%p967) target = $region36
        $region35: #{tpu_custom_call.1} parent=31 // pred_region
          %s970 = smul.u32 2, %s22
          %972 = vsyncadd %s963, 0
          %s973 = smul.addr %s21, 4
          %s974 = sadd.s32 %s970, %s973
          %s975 = smul.addr %s974, 8
          %s976 = scalar_lea.hbm %s3, %s975
          %s977 = sshll.u32 %s966, 4
          %s978 = int_to_ptr.vmem [resolvable:$true] %s977
          %s979 = sshll.u32 %s976, 4
          %s980 = int_to_ptr.hbm [resolvable:$true] %s979
          %985 = dma.vmem_to_hbm [thread:$0]  %s978, 512, %s980, %s963, 256, 256, 16
        $region36: #{tpu_custom_call.1} parent=31 // pred_fallthru
          _
      $region32: #{tpu_custom_call.1} parent=5 // pred_fallthru
        _
      %p986 = scmp.le.s32.totalorder 2, %s12
      // Predicated region
      $region37: #{tpu_custom_call.1} parent=5 // pred_check
        %p987 = pneg %p986
      $region38: #{tpu_custom_call.1} parent=5 // pred_check_branch
        %989 = sbr.rel (%p987) target = $region40
      $region39: #{tpu_custom_call.1} parent=5 // pred_region
        %s990 = ssub.s32 %s12, 2
        // Predicated region
        $region41: #{tpu_custom_call.1} parent=39 // pred_check
          %p991 = pneg %p133
        $region42: #{tpu_custom_call.1} parent=39 // pred_check_branch
          %993 = sbr.rel (%p991) target = $region44
        $region43: #{tpu_custom_call.1} parent=39 // pred_region
          %s994 = sand.u32 %s118, 1
          %s995 = scalar_lea.sflag [#allocation3], %s994
          %s996 = sand.u32 %s118, 1
          %s997 = smul.addr %s996, 32
          %s998 = scalar_lea.vmem [#allocation2], %s997
          %1000 = dma.done %s995, 512
        $region44: #{tpu_custom_call.1} parent=39 // pred_fallthru
          _
      $region40: #{tpu_custom_call.1} parent=5 // pred_fallthru
        _
    $region6: #{tpu_custom_call.1} parent=1 // loop_footer
      %s16 = sadd.s32 1, %s12
    $region7: #{tpu_custom_call.1} parent=1 // loop_footer_branch
      %11 = sbr.rel target = $region3
    $region8: #{tpu_custom_call.1} parent=1 // loop_exit
      _
    %1001 = vsyncpa [#allocation3], 1
    %s1002 = scalar_lea.sflag [#allocation3], 1
    %1003 = vsyncpa %s1002, 1

</llo_original>
